<compile_context>
chip_gen: v5e
topology: v5e:2x2
jax: 0.10.0
libtpu: 0.0.40
codegen_flags: <defaults>
</compile_context>

<pallas_src>
import jax
import jax.numpy as jnp
from jax import lax
from jax.experimental import pallas as pl
from jax.experimental.pallas import tpu as pltpu


def _round_up(x: int, m: int) -> int:
    return -(-x // m) * m


def _make_kernel(norm: bool, p: int, d: int):
    def kernel(hypo_ref, paths_ref, out_ref):
        # hypo_ref : (TB, D)      native dtype
        # paths_ref: (TB, P*D)    native dtype, flattened segments
        # out_ref  : (1, 8, 128)  f32 partial-sum block

        # Segment sum: torch.sum(rep_path, dim=0) per group, accumulated in
        # f32 from lane-aligned D-slices (D % 128 == 0 -> unmasked loads).
        acc = paths_ref[:, pl.ds(0, d)].astype(jnp.float32)          # (TB, D)
        for k in range(1, p):
            acc = acc + paths_ref[:, pl.ds(k * d, d)].astype(jnp.float32)

        hypo = hypo_ref[...].astype(jnp.float32)                     # (TB, D)

        # F.mse_loss(..., reduction='none')
        diff = hypo - acc
        sq = diff * diff                                             # (TB, D)

        if norm:
            row_loss = jnp.sum(sq, axis=1, keepdims=True)            # (TB, 1)
            inv_norm = lax.rsqrt(jnp.sum(hypo * hypo, axis=1, keepdims=True))
            partial = jnp.sum(row_loss * inv_norm)
        else:
            partial = jnp.sum(sq)

        # Lane/sublane-dense partial-sum block (one unmasked vector store).
        out_ref[...] = jnp.broadcast_to(partial, out_ref.shape).astype(out_ref.dtype)

    return kernel


def compositional_loss(rep_hypo: jax.Array, rep_paths: jax.Array,
                       norm: bool = False, *,
                       vmem_budget_bytes: int = 4 << 20):
    """rep_hypo: (B, D), rep_paths: (B, P, D), native dtype -> scalar f32."""
    B, D = rep_hypo.shape
    Bp, P, Dp = rep_paths.shape
    assert B == Bp and D == Dp
    assert D % 128 == 0, "D must be a multiple of 128 for lane-aligned slices"

    itemsize = jnp.dtype(rep_paths.dtype).itemsize
    bytes_per_row = (P + 1) * D * itemsize

    # Batch tile: biggest multiple of 8 within the per-step VMEM budget
    # (double-buffering accounted for via the explicit vmem_limit below).
    tb = max(8, (vmem_budget_bytes // bytes_per_row) // 8 * 8)
    if B >= 16:
        # Keep >= 2 tiles so v7x's two TensorCores split the parallel axis.
        tb = min(tb, _round_up(-(-B // 2), 8))

    if tb >= B:
        tb = B                       # single tile; block shape == array shape
        main_b = B
    else:
        main_b = (B // tb) * tb      # full tiles through the kernel
    num_tiles = max(1, main_b // tb)

    # Free, row-major-contiguous reshape: (B, P, D) -> (B, P*D).
    paths_flat = rep_paths.reshape(B, P * D)

    tile_bytes = tb * bytes_per_row
    vmem_limit = int(2 * tile_bytes + (8 << 20))   # 2-deep pipeline + slack

    partials = pl.pallas_call(
        _make_kernel(norm, P, D),
        out_shape=jax.ShapeDtypeStruct((num_tiles, 8, 128), jnp.float32),
        grid=(num_tiles,),
        in_specs=[
            pl.BlockSpec((tb, D), lambda i: (i, 0)),
            pl.BlockSpec((tb, P * D), lambda i: (i, 0)),
        ],
        out_specs=pl.BlockSpec((1, 8, 128), lambda i: (i, 0, 0)),
        compiler_params=pltpu.CompilerParams(
            dimension_semantics=("parallel",),
            vmem_limit_bytes=vmem_limit),
    )(rep_hypo, paths_flat)          # native dtype: no wrapper-side upcast

    total = jnp.sum(partials[:, 0, 0])

    # Ragged tail (< tb rows): tiny, handled in plain JAX — avoids padding or
    # copying the dominant (B, P, D) tensor.
    if main_b < B:
        h = rep_hypo[main_b:].astype(jnp.float32)
        p_sum = jnp.sum(rep_paths[main_b:].astype(jnp.float32), axis=1)
        row = jnp.sum((h - p_sum) ** 2, axis=1)
        if norm:
            row = row * lax.rsqrt(jnp.sum(h * h, axis=1))
        total = total + jnp.sum(row)

    # Mean over the true global batch size, folded with the 0.01 scale.
    return total * (0.01 / B)


def compositional_loss_ref(rep_hypo, rep_paths, norm=False):
    rep_hypo = rep_hypo.astype(jnp.float32)
    rep_paths = rep_paths.astype(jnp.float32)
    rep_path = jnp.sum(rep_paths, axis=1)
    losses = jnp.sum((rep_hypo - rep_path) ** 2, axis=1)
    if norm:
        losses = losses / jnp.linalg.norm(rep_hypo, axis=1)
    return jnp.mean(losses) * 0.01


if __name__ == "__main__":
    key = jax.random.PRNGKey(0)
    k1, k2, k3, k4, k5, k6 = jax.random.split(key, 6)

    # Case 1: small single-tile shapes (B multiple of 8).
    B, P, D = 8, 4, 128
    rep_hypo = jax.random.normal(k1, (B, D), dtype=jnp.float32)
    rep_paths = jax.random.normal(k2, (B, P, D), dtype=jnp.float32)
    for norm in (False, True):
        loss = compositional_loss(rep_hypo, rep_paths, norm=norm)
        jax.block_until_ready(loss)
        ref = compositional_loss_ref(rep_hypo, rep_paths, norm=norm)
        assert jnp.allclose(loss, ref, rtol=1e-5, atol=1e-5), (norm, loss, ref)

    # Case 2: ragged batch + forced multi-tile grid (TB=8 -> 2 kernel tiles,
    # 4 tail rows in plain JAX) to exercise the parallel grid and the
    # no-padding ragged path.
    B2, P2, D2 = 20, 4, 128
    rep_hypo2 = jax.random.normal(k3, (B2, D2), dtype=jnp.float32)
    rep_paths2 = jax.random.normal(k4, (B2, P2, D2), dtype=jnp.float32)
    small_budget = 8 * (P2 + 1) * D2 * 4   # forces TB = 8
    for norm in (False, True):
        loss = compositional_loss(rep_hypo2, rep_paths2, norm=norm,
                                  vmem_budget_bytes=small_budget)
        jax.block_until_ready(loss)
        ref = compositional_loss_ref(rep_hypo2, rep_paths2, norm=norm)
        assert jnp.allclose(loss, ref, rtol=1e-5, atol=1e-5), (norm, loss, ref)

    # Case 3: bf16 inputs streamed natively (no wrapper upcast), widened
    # per-tile inside the kernel.
    B3, P3, D3 = 16, 4, 128
    rep_hypo3 = jax.random.normal(k5, (B3, D3), dtype=jnp.bfloat16)
    rep_paths3 = jax.random.normal(k6, (B3, P3, D3), dtype=jnp.bfloat16)
    for norm in (False, True):
        loss = compositional_loss(rep_hypo3, rep_paths3, norm=norm)
        jax.block_until_ready(loss)
        ref = compositional_loss_ref(rep_hypo3, rep_paths3, norm=norm)
        assert jnp.allclose(loss, ref, rtol=1e-4, atol=1e-4), (norm, loss, ref)

    print("KERNEL_OK")
</pallas_src>

<mosaic_0001>
module attributes {stable_mosaic.version = 11 : i64} {
  func.func @kernel(%arg0: i32, %arg1: memref<8x128xf32, #tpu.memory_space<vmem>>, %arg2: memref<8x512xf32, #tpu.memory_space<vmem>>, %arg3: memref<1x8x128xf32, #tpu.memory_space<vmem>>) attributes {dimension_semantics = [#tpu.dimension_semantics<parallel>], iteration_bounds = array<i64: 1>, scalar_prefetch = 0 : i64, scratch_operands = 0 : i64, tpu.core_type = #tpu.core_type<tc>, window_params = [{transform_indices = @transform_0, window_bounds = array<i64: 8, 128>}, {transform_indices = @transform_1, window_bounds = array<i64: 8, 512>}, {transform_indices = @transform_2, window_bounds = array<i64: 1, 8, 128>}]} {
    %c0 = arith.constant 0 : index
    %c0_0 = arith.constant 0 : index
    %0 = vector.load %arg2[%c0, %c0_0] : memref<8x512xf32, #tpu.memory_space<vmem>>, vector<8x128xf32>
    %c0_1 = arith.constant 0 : index
    %c128 = arith.constant 128 : index
    %1 = vector.load %arg2[%c0_1, %c128] : memref<8x512xf32, #tpu.memory_space<vmem>>, vector<8x128xf32>
    %2 = arith.addf %0, %1 : vector<8x128xf32>
    %c0_2 = arith.constant 0 : index
    %c256 = arith.constant 256 : index
    %3 = vector.load %arg2[%c0_2, %c256] : memref<8x512xf32, #tpu.memory_space<vmem>>, vector<8x128xf32>
    %4 = arith.addf %2, %3 : vector<8x128xf32>
    %c0_3 = arith.constant 0 : index
    %c384 = arith.constant 384 : index
    %5 = vector.load %arg2[%c0_3, %c384] : memref<8x512xf32, #tpu.memory_space<vmem>>, vector<8x128xf32>
    %6 = arith.addf %4, %5 : vector<8x128xf32>
    %c0_4 = arith.constant 0 : index
    %c0_5 = arith.constant 0 : index
    %7 = vector.load %arg1[%c0_4, %c0_5] : memref<8x128xf32, #tpu.memory_space<vmem>>, vector<8x128xf32>
    %8 = arith.subf %7, %6 : vector<8x128xf32>
    %9 = arith.mulf %8, %8 : vector<8x128xf32>
    %10 = vector.shape_cast %9 : vector<8x128xf32> to vector<1x8x128xf32>
    %cst = arith.constant dense<0.000000e+00> : vector<1xf32>
    %11 = vector.multi_reduction <add>, %10, %cst [1, 2] : vector<1x8x128xf32> to vector<1xf32>
    %12 = vector.shape_cast %11 : vector<1xf32> to vector<1x1x1xf32>
    %13 = vector.extract %12[0, 0, 0] : f32 from vector<1x1x1xf32>
    %14 = vector.broadcast %13 : f32 to vector<1x8x128xf32>
    %c0_6 = arith.constant 0 : index
    %c0_7 = arith.constant 0 : index
    %c0_8 = arith.constant 0 : index
    %15 = vector.load %arg3[%c0_6, %c0_7, %c0_8] : memref<1x8x128xf32, #tpu.memory_space<vmem>>, vector<1x8x128xf32>
    tpu.vector_store %arg3[%c0_6, %c0_7, %c0_8], %14 {strides = array<i32>} : memref<1x8x128xf32, #tpu.memory_space<vmem>>, vector<1x8x128xf32>,
    return
  }
  func.func @transform_0(%arg0: i32) -> (i32, i32) {
    %c0_i32 = arith.constant 0 : i32
    %c0_i32_0 = arith.constant 0 : i32
    return %arg0, %c0_i32 : i32, i32
  }
  func.func @transform_1(%arg0: i32) -> (i32, i32) {
    %c0_i32 = arith.constant 0 : i32
    %c0_i32_0 = arith.constant 0 : i32
    return %arg0, %c0_i32 : i32, i32
  }
  func.func @transform_2(%arg0: i32) -> (i32, i32, i32) {
    %c0_i32 = arith.constant 0 : i32
    %c0_i32_0 = arith.constant 0 : i32
    %c0_i32_1 = arith.constant 0 : i32
    return %arg0, %c0_i32, %c0_i32_0 : i32, i32, i32
  }
}

</mosaic_0001>

<llo_original>
// kernel: tpu_custom_call.1
$region0: #{tpu_custom_call.1}
  #allocation0 [shape = 'u32[]', space=smem, size = 0x4, offset = 0x4, fixed_abs, tag = 'smem constant byte address 0x4 - core index']
  #allocation1 [shape = 'u32[72,128]{1,0:T(1,128)}', space=vmem, size = 0x9000, scoped, tag = 'internal scratch']
  %s0 = inlined_call_operand.hbm [shape: f32[8,128], index: 0, kind: input, shape index: {}]
  %s1 = inlined_call_operand.hbm [shape: f32[8,512], index: 1, kind: input, shape index: {}]
  %s2 = inlined_call_operand.hbm [shape: f32[1,8,128], index: 2, kind: output, shape index: {}]
  %s3 = sld [smem:[#allocation0]]
  $region26: #{tpu_custom_call.1} parent=0
    _
  %s5 = ssub.s32 1, %s3
  %s6 = scalar_select 0, %s5, %s3
  $region1: #{tpu_custom_call.1} parent=0
    #allocation2 [shape = 'u8[4096]{0}', space=vmem, size = 0x1000, scoped, tag = 'input window, operand 0, single buffered']
    #allocation3 [shape = 's32[1]{0}', space=sflag, size = 0x4, scoped, tag = 'scoped memory for tpu_custom_call.1']
    #allocation4 [shape = 's32[1]{0}', space=sflag, size = 0x4, scoped, tag = 'scoped memory for tpu_custom_call.1']
    #allocation5 [shape = 'u8[16384]{0}', space=vmem, size = 0x4000, scoped, tag = 'input window, operand 1, single buffered']
    #allocation6 [shape = 's32[1]{0}', space=sflag, size = 0x4, scoped, tag = 'scoped memory for tpu_custom_call.1']
    #allocation7 [shape = 'u8[4096]{0}', space=vmem, size = 0x1000, scoped, tag = 'output window, operand 0, single buffered']
    %7 = vsyncpa [#allocation3], 0
    %8 = vsyncpa [#allocation6], 0
    %9 = vsyncpa [#allocation4], 0
    // Predicated region
    $region2: #{tpu_custom_call.1} parent=1 // pred_check
      _
    $region3: #{tpu_custom_call.1} parent=1 // pred_check_branch
      %11 = sbr.rel (0) target = $region5
    $region4: #{tpu_custom_call.1} parent=1 // pred_region
      %13 = vsyncadd [#allocation3], 0
      %s15 = sshll.u32 %s0, 4
      %s16 = int_to_ptr.hbm [resolvable:$true] %s15
      %s17 = sshll.u32 [#allocation2], 4
      %s18 = int_to_ptr.vmem [resolvable:$true] %s17
      %20 = dma.hbm_to_vmem [thread:$0]  %s16, 128, %s18, [#allocation3]
    $region5: #{tpu_custom_call.1} parent=1 // pred_fallthru
      _
    // Predicated region
    $region6: #{tpu_custom_call.1} parent=1 // pred_check
      _
    $region7: #{tpu_custom_call.1} parent=1 // pred_check_branch
      %22 = sbr.rel (0) target = $region9
    $region8: #{tpu_custom_call.1} parent=1 // pred_region
      %24 = vsyncadd [#allocation6], 0
      %s26 = sshll.u32 %s1, 4
      %s27 = int_to_ptr.hbm [resolvable:$true] %s26
      %s28 = sshll.u32 [#allocation5], 4
      %s29 = int_to_ptr.vmem [resolvable:$true] %s28
      %31 = dma.hbm_to_vmem [thread:$0]  %s27, 512, %s29, [#allocation6]
    $region9: #{tpu_custom_call.1} parent=1 // pred_fallthru
      _
    // Predicated region
    $region10: #{tpu_custom_call.1} parent=1 // pred_check
      _
    $region11: #{tpu_custom_call.1} parent=1 // pred_check_branch
      %33 = sbr.rel (0) target = $region13
    $region12: #{tpu_custom_call.1} parent=1 // pred_region
      %35 = dma.done [#allocation3], 128
    $region13: #{tpu_custom_call.1} parent=1 // pred_fallthru
      _
    // Predicated region
    $region14: #{tpu_custom_call.1} parent=1 // pred_check
      _
    $region15: #{tpu_custom_call.1} parent=1 // pred_check_branch
      %37 = sbr.rel (0) target = $region17
    $region16: #{tpu_custom_call.1} parent=1 // pred_region
      %39 = dma.done [#allocation6], 512
    $region17: #{tpu_custom_call.1} parent=1 // pred_fallthru
      _
    %v40 = vld [vmem:[#allocation5] sm:$0xff]
    %v41 = vld [vmem:[#allocation5 + $0x8] sm:$0xff]
    %v42 = vadd.f32 %v40, %v41
    %v43 = vld [vmem:[#allocation5 + $0x10] sm:$0xff]
    %v44 = vadd.f32 %v42, %v43
    %v45 = vld [vmem:[#allocation5 + $0x18] sm:$0xff]
    %v46 = vadd.f32 %v44, %v45
    %v47 = vld [vmem:[#allocation2] sm:$0xff]
    %v48 = vsub.f32 %v47, %v46
    %v49 = vmul.f32 %v48, %v48
    %50 = vadd.xlane.f32.xlu0 %v49
    %v51 = vpop.xlane.xlu0 %50
    %v52 = vrot.slane %v51, 4
    %v53 = vadd.f32 %v51, %v52
    %v54 = vrot.slane %v53, 2
    %v55 = vadd.f32 %v53, %v54
    %v56 = vrot.slane %v55, 1
    %v57 = vadd.f32 %v55, %v56
    %s58 = vtos %v57
    %v59 = vstv %s58
    %60 = vst [vmem:[#allocation7] sm:$0xff] %v59
    // Predicated region
    $region18: #{tpu_custom_call.1} parent=1 // pred_check
      _
    $region19: #{tpu_custom_call.1} parent=1 // pred_check_branch
      %62 = sbr.rel (0) target = $region21
    $region20: #{tpu_custom_call.1} parent=1 // pred_region
      %64 = vsyncadd [#allocation4], 0
      %s66 = sshll.u32 [#allocation7], 4
      %s67 = int_to_ptr.vmem [resolvable:$true] %s66
      %s68 = sshll.u32 %s2, 4
      %s69 = int_to_ptr.hbm [resolvable:$true] %s68
      %71 = dma.vmem_to_hbm [thread:$0]  %s67, 128, %s69, [#allocation4]
    $region21: #{tpu_custom_call.1} parent=1 // pred_fallthru
      _
    // Predicated region
    $region22: #{tpu_custom_call.1} parent=1 // pred_check
      _
    $region23: #{tpu_custom_call.1} parent=1 // pred_check_branch
      %73 = sbr.rel (0) target = $region25
    $region24: #{tpu_custom_call.1} parent=1 // pred_region
      %75 = dma.done [#allocation4], 128
    $region25: #{tpu_custom_call.1} parent=1 // pred_fallthru
      _
    %76 = vsyncpa [#allocation3], 1
    %77 = vsyncpa [#allocation6], 1
    %78 = vsyncpa [#allocation4], 1

</llo_original>
